<compile_context>
chip_gen: v7x
topology: tpu7x:2x2x1
jax: 0.10.0
libtpu: 0.0.40
codegen_flags: <defaults>
</compile_context>

<pallas_src>
import jax
import jax.numpy as jnp
from jax.experimental import pallas as pl
from jax.experimental.pallas import tpu as pltpu


# --------------------------------------------------------------------------
# Kernel 1: x_updated = x + sum_l (l + 1) * xs[l]   (flat, lane-dense view)
# --------------------------------------------------------------------------
def update_kernel(x_ref, xs_ref, out_ref):
    """x_ref: (tile_r, 128), xs_ref: (tile_r, 128) [L squeezed], out_ref: (tile_r, 128)."""
    l = pl.program_id(1)

    @pl.when(l == 0)
    def _init():
        out_ref[...] = x_ref[...]

    scale = (l + 1).astype(jnp.float32)
    out_ref[...] = out_ref[...] + xs_ref[...] * scale


# --------------------------------------------------------------------------
# Kernel 2: z = x @ W^T + b   (tiny; native layout, VPU broadcast FMAs)
# --------------------------------------------------------------------------
def linear_kernel(x_ref, wT_ref, b_ref, z_ref):
    """x_ref: (tile_b, n_dims), wT_ref: (n_dims, n_targets), b_ref: (1, n_targets)."""
    x = x_ref[...]
    w = wT_ref[...]
    n_dims = x.shape[1]
    # Accumulate all n_targets columns, single store at the end.
    acc = x[:, 0:1] * w[0:1, :]
    for d in range(1, n_dims):
        acc = acc + x[:, d:d + 1] * w[d:d + 1, :]
    z_ref[...] = (acc + b_ref[...]).astype(z_ref.dtype)


# --------------------------------------------------------------------------
# Wrapper
# --------------------------------------------------------------------------
_LANE = 128
# 2 buffers * (x + xs-slab + out) * tile_r * 128 * 4B  ->  8192 rows ~= 24 MiB,
# safe on v7x (64 MiB VMEM) and leaves the 0.35us/step cost well amortized.
_MAX_TILE_ROWS = 8192
_MAX_TILE_B_Z = 4096


def neuron_loop_forward(x, xs, weight, bias):
    """Functional NeuronLoop.forward.

    x: (B, n_dims), xs: (L, B, n_dims), weight: (n_targets, n_dims), bias: (n_targets,)
    Returns (z, x_updated):
      z         = x @ weight.T + bias            (computed from the PRE-update x)
      x_updated = x + sum_i (i + 1) * xs[i]      (PyTorch does this in place on x)
    """
    B, n_dims = x.shape
    L = xs.shape[0]
    n_targets = weight.shape[0]

    # ---------------- z = Linear(x): tiny secondary read of x -------------
    tile_bz = B if B <= _MAX_TILE_B_Z else _MAX_TILE_B_Z
    wT = weight.T                      # (n_dims, n_targets), 15 floats
    b2 = bias.reshape(1, n_targets)

    z = pl.pallas_call(
        linear_kernel,
        out_shape=jax.ShapeDtypeStruct((B, n_targets), jnp.float32),
        grid=(pl.cdiv(B, tile_bz),),
        in_specs=[
            pl.BlockSpec((tile_bz, n_dims), lambda i: (i, 0)),
            pl.BlockSpec((n_dims, n_targets), lambda i: (0, 0)),
            pl.BlockSpec((1, n_targets), lambda i: (0, 0)),
        ],
        out_specs=pl.BlockSpec((tile_bz, n_targets), lambda i: (i, 0)),
        compiler_params=pltpu.CompilerParams(
            dimension_semantics=("parallel",),
        ),
    )(x, wT, b2)

    # ---------------- x_updated: flat lane-dense elementwise stream -------
    N = B * n_dims
    N_pad = ((N + _LANE - 1) // _LANE) * _LANE
    x_flat = x.reshape(N)              # free reshape (row-major contiguous)
    xs_flat = xs.reshape(L, N)         # free reshape
    if N_pad != N:
        # Pad up to a lane multiple instead of falling back to one huge block.
        x_flat = jnp.pad(x_flat, (0, N_pad - N))
        xs_flat = jnp.pad(xs_flat, ((0, 0), (0, N_pad - N)))

    R = N_pad // _LANE
    x2 = x_flat.reshape(R, _LANE)
    xs2 = xs_flat.reshape(L, R, _LANE)

    tile_r = R if R <= _MAX_TILE_ROWS else _MAX_TILE_ROWS
    grid = (pl.cdiv(R, tile_r), L)     # L innermost: out block is a resident accumulator

    out2 = pl.pallas_call(
        update_kernel,
        out_shape=jax.ShapeDtypeStruct((R, _LANE), jnp.float32),
        grid=grid,
        in_specs=[
            pl.BlockSpec((tile_r, _LANE), lambda i, l: (i, 0)),          # x view
            pl.BlockSpec((None, tile_r, _LANE), lambda i, l: (l, i, 0)), # xs[l] slab
        ],
        out_specs=pl.BlockSpec((tile_r, _LANE), lambda i, l: (i, 0)),    # accumulator
        compiler_params=pltpu.CompilerParams(
            dimension_semantics=("parallel", "arbitrary"),
            vmem_limit_bytes=40 * 1024 * 1024,   # fits v7x's 64 MiB, > v5e's 16 MiB default
        ),
    )(x2, xs2)

    x_updated = out2.reshape(N_pad)[:N].reshape(B, n_dims)

    # TODO(synk): PyTorch mutates `x` in place; JAX cannot alias into the caller's
    # buffer, so the updated x is returned functionally as a second output.
    return z, x_updated


if __name__ == "__main__":
    n_dims, n_targets, batch, n_xs = 5, 3, 8, 4

    key = jax.random.PRNGKey(0)
    kx, kxs, kw, kb = jax.random.split(key, 4)

    # Deterministic params (mimics torch.nn.Linear's uniform(-1/sqrt(fan_in), ...))
    bound = 1.0 / (n_dims ** 0.5)
    weight = jax.random.uniform(kw, (n_targets, n_dims), jnp.float32, -bound, bound)
    bias = jax.random.uniform(kb, (n_targets,), jnp.float32, -bound, bound)
    x = jax.random.normal(kx, (batch, n_dims), jnp.float32)
    xs = jax.random.normal(kxs, (n_xs, batch, n_dims), jnp.float32)

    z, x_updated = neuron_loop_forward(x, xs, weight, bias)
    z, x_updated = jax.block_until_ready((z, x_updated))

    # Plain-JAX reference
    z_ref = x @ weight.T + bias
    scales = jnp.arange(1, n_xs + 1, dtype=jnp.float32)
    x_upd_ref = x + jnp.einsum("l,lbd->bd", scales, xs)

    assert z.shape == (batch, n_targets)
    assert x_updated.shape == (batch, n_dims)
    assert jnp.allclose(z, z_ref, atol=1e-5, rtol=1e-5)
    assert jnp.allclose(x_updated, x_upd_ref, atol=1e-5, rtol=1e-5)

    print("KERNEL_OK")
</pallas_src>

<mosaic_0001>
module attributes {stable_mosaic.version = 11 : i64} {
  func.func @linear_kernel(%arg0: i32, %arg1: memref<8x5xf32, #tpu.memory_space<vmem>>, %arg2: memref<5x3xf32, #tpu.memory_space<vmem>>, %arg3: memref<1x3xf32, #tpu.memory_space<vmem>>, %arg4: memref<8x3xf32, #tpu.memory_space<vmem>>) attributes {dimension_semantics = [#tpu.dimension_semantics<parallel>], iteration_bounds = array<i64: 1>, scalar_prefetch = 0 : i64, scratch_operands = 0 : i64, tpu.core_type = #tpu.core_type<tc>, window_params = [{transform_indices = @transform_0, window_bounds = array<i64: 8, 5>}, {pipeline_mode = #tpu.pipeline_mode<synchronous>, transform_indices = @transform_1, window_bounds = array<i64: 5, 3>}, {pipeline_mode = #tpu.pipeline_mode<synchronous>, transform_indices = @transform_2, window_bounds = array<i64: 1, 3>}, {transform_indices = @transform_3, window_bounds = array<i64: 8, 3>}]} {
    %c0 = arith.constant 0 : index
    %c0_0 = arith.constant 0 : index
    %0 = vector.load %arg1[%c0, %c0_0] : memref<8x5xf32, #tpu.memory_space<vmem>>, vector<8x5xf32>
    %c0_1 = arith.constant 0 : index
    %c0_2 = arith.constant 0 : index
    %1 = vector.load %arg2[%c0_1, %c0_2] : memref<5x3xf32, #tpu.memory_space<vmem>>, vector<5x3xf32>
    %2 = vector.extract_strided_slice %0 {offsets = [0, 0], sizes = [8, 1], strides = [1, 1]} : vector<8x5xf32> to vector<8x1xf32>
    %3 = vector.extract_strided_slice %1 {offsets = [0, 0], sizes = [1, 3], strides = [1, 1]} : vector<5x3xf32> to vector<1x3xf32>
    %4 = vector.broadcast %2 : vector<8x1xf32> to vector<8x3xf32>
    %5 = vector.broadcast %3 : vector<1x3xf32> to vector<8x3xf32>
    %6 = arith.mulf %4, %5 : vector<8x3xf32>
    %7 = vector.extract_strided_slice %0 {offsets = [0, 1], sizes = [8, 1], strides = [1, 1]} : vector<8x5xf32> to vector<8x1xf32>
    %8 = vector.extract_strided_slice %1 {offsets = [1, 0], sizes = [1, 3], strides = [1, 1]} : vector<5x3xf32> to vector<1x3xf32>
    %9 = vector.broadcast %7 : vector<8x1xf32> to vector<8x3xf32>
    %10 = vector.broadcast %8 : vector<1x3xf32> to vector<8x3xf32>
    %11 = arith.mulf %9, %10 : vector<8x3xf32>
    %12 = arith.addf %6, %11 : vector<8x3xf32>
    %13 = vector.extract_strided_slice %0 {offsets = [0, 2], sizes = [8, 1], strides = [1, 1]} : vector<8x5xf32> to vector<8x1xf32>
    %14 = vector.extract_strided_slice %1 {offsets = [2, 0], sizes = [1, 3], strides = [1, 1]} : vector<5x3xf32> to vector<1x3xf32>
    %15 = vector.broadcast %13 : vector<8x1xf32> to vector<8x3xf32>
    %16 = vector.broadcast %14 : vector<1x3xf32> to vector<8x3xf32>
    %17 = arith.mulf %15, %16 : vector<8x3xf32>
    %18 = arith.addf %12, %17 : vector<8x3xf32>
    %19 = vector.extract_strided_slice %0 {offsets = [0, 3], sizes = [8, 1], strides = [1, 1]} : vector<8x5xf32> to vector<8x1xf32>
    %20 = vector.extract_strided_slice %1 {offsets = [3, 0], sizes = [1, 3], strides = [1, 1]} : vector<5x3xf32> to vector<1x3xf32>
    %21 = vector.broadcast %19 : vector<8x1xf32> to vector<8x3xf32>
    %22 = vector.broadcast %20 : vector<1x3xf32> to vector<8x3xf32>
    %23 = arith.mulf %21, %22 : vector<8x3xf32>
    %24 = arith.addf %18, %23 : vector<8x3xf32>
    %25 = vector.extract_strided_slice %0 {offsets = [0, 4], sizes = [8, 1], strides = [1, 1]} : vector<8x5xf32> to vector<8x1xf32>
    %26 = vector.extract_strided_slice %1 {offsets = [4, 0], sizes = [1, 3], strides = [1, 1]} : vector<5x3xf32> to vector<1x3xf32>
    %27 = vector.broadcast %25 : vector<8x1xf32> to vector<8x3xf32>
    %28 = vector.broadcast %26 : vector<1x3xf32> to vector<8x3xf32>
    %29 = arith.mulf %27, %28 : vector<8x3xf32>
    %30 = arith.addf %24, %29 : vector<8x3xf32>
    %c0_3 = arith.constant 0 : index
    %c0_4 = arith.constant 0 : index
    %31 = vector.load %arg3[%c0_3, %c0_4] : memref<1x3xf32, #tpu.memory_space<vmem>>, vector<1x3xf32>
    %32 = vector.broadcast %31 : vector<1x3xf32> to vector<8x3xf32>
    %33 = arith.addf %30, %32 : vector<8x3xf32>
    %c0_5 = arith.constant 0 : index
    %c0_6 = arith.constant 0 : index
    %34 = vector.load %arg4[%c0_5, %c0_6] : memref<8x3xf32, #tpu.memory_space<vmem>>, vector<8x3xf32>
    tpu.vector_store %arg4[%c0_5, %c0_6], %33 {strides = array<i32>} : memref<8x3xf32, #tpu.memory_space<vmem>>, vector<8x3xf32>,
    return
  }
  func.func @transform_0(%arg0: i32) -> (i32, i32) {
    %c0_i32 = arith.constant 0 : i32
    %c0_i32_0 = arith.constant 0 : i32
    return %arg0, %c0_i32 : i32, i32
  }
  func.func @transform_1(%arg0: i32) -> (i32, i32) {
    %c0_i32 = arith.constant 0 : i32
    %c0_i32_0 = arith.constant 0 : i32
    %c0_i32_1 = arith.constant 0 : i32
    return %c0_i32, %c0_i32_0 : i32, i32
  }
  func.func @transform_2(%arg0: i32) -> (i32, i32) {
    %c0_i32 = arith.constant 0 : i32
    %c0_i32_0 = arith.constant 0 : i32
    %c0_i32_1 = arith.constant 0 : i32
    return %c0_i32, %c0_i32_0 : i32, i32
  }
  func.func @transform_3(%arg0: i32) -> (i32, i32) {
    %c0_i32 = arith.constant 0 : i32
    %c0_i32_0 = arith.constant 0 : i32
    return %arg0, %c0_i32 : i32, i32
  }
}

</mosaic_0001>

<llo_original>
// kernel: tpu_custom_call.1
$region0: #{tpu_custom_call.1}
  #allocation0 [shape = 'u32[]', space=smem, size = 0x4, offset = 0x4, fixed_abs, tag = 'smem constant byte address 0x4 - core index']
  #allocation1 [shape = 'u32[144,128]{1,0:T(1,128)}', space=vmem, size = 0x12000, scoped, tag = 'internal scratch']
  %s0 = inlined_call_operand.vmem [shape: f32[8,5], index: 0, kind: input, shape index: {}]
  %s1 = inlined_call_operand.vmem [shape: f32[5,3], index: 1, kind: input, shape index: {}]
  %s2 = inlined_call_operand.vmem [shape: f32[1,3], index: 2, kind: input, shape index: {}]
  %s3 = inlined_call_operand.vmem [shape: f32[8,3], index: 3, kind: output, shape index: {}]
  %s4 = sld [smem:[#allocation0]]
  $region22: #{tpu_custom_call.1} parent=0
    _
  %s6 = ssub.s32 1, %s4
  %s7 = scalar_select 0, %s6, %s4
  // Predicated region
  $region2: #{tpu_custom_call.1} parent=0 // pred_check
    _
  $region3: #{tpu_custom_call.1} parent=0 // pred_check_branch
    %9 = sbr.rel (0) target = $region5
  $region4: #{tpu_custom_call.1} parent=0 // pred_region
    _
  $region5: #{tpu_custom_call.1} parent=0 // pred_fallthru
    _
  // Predicated region
  $region6: #{tpu_custom_call.1} parent=0 // pred_check
    _
  $region7: #{tpu_custom_call.1} parent=0 // pred_check_branch
    %11 = sbr.rel (0) target = $region9
  $region8: #{tpu_custom_call.1} parent=0 // pred_region
    _
  $region9: #{tpu_custom_call.1} parent=0 // pred_fallthru
    _
  // Predicated region
  $region10: #{tpu_custom_call.1} parent=0 // pred_check
    _
  $region11: #{tpu_custom_call.1} parent=0 // pred_check_branch
    %13 = sbr.rel (0) target = $region13
  $region12: #{tpu_custom_call.1} parent=0 // pred_region
    _
  $region13: #{tpu_custom_call.1} parent=0 // pred_fallthru
    _
  %v14 = vld [vmem:[%s0] sm:$0xff]
  %v15 = vld [vmem:[%s1] sm:$0x1f]
  %17 = vset.pattern.permute.xlu0 0
  %18 = vperm.xlu0 %17, %v14
  %v19 = vpop.permute.xlu0 %18
  %v21 = vlaneseq
  %v22 = vshrl.u32 %v21, 7
  %v23 = vsub.s32 0, %v22
  %v24 = vrot.slane %v15, %v23
  %v25 = vmul.f32 %v19, %v24
  %26 = vset.pattern.permute.xlu0 1
  %27 = vperm.xlu0 %26, %v14
  %v28 = vpop.permute.xlu0 %27
  %v30 = vlaneseq
  %v31 = vshrl.u32 %v30, 7
  %v32 = vsub.s32 1, %v31
  %v33 = vrot.slane %v15, %v32
  %v34 = vmul.f32 %v28, %v33
  %v35 = vadd.f32 %v25, %v34
  %36 = vset.pattern.permute.xlu0 2
  %37 = vperm.xlu0 %36, %v14
  %v38 = vpop.permute.xlu0 %37
  %v40 = vlaneseq
  %v41 = vshrl.u32 %v40, 7
  %v42 = vsub.s32 2, %v41
  %v43 = vrot.slane %v15, %v42
  %v44 = vmul.f32 %v38, %v43
  %v45 = vadd.f32 %v35, %v44
  %46 = vset.pattern.permute.xlu0 3
  %47 = vperm.xlu0 %46, %v14
  %v48 = vpop.permute.xlu0 %47
  %v50 = vlaneseq
  %v51 = vshrl.u32 %v50, 7
  %v52 = vsub.s32 3, %v51
  %v53 = vrot.slane %v15, %v52
  %v54 = vmul.f32 %v48, %v53
  %v55 = vadd.f32 %v45, %v54
  %56 = vset.pattern.permute.xlu0 4
  %57 = vperm.xlu0 %56, %v14
  %v58 = vpop.permute.xlu0 %57
  %v60 = vlaneseq
  %v61 = vshrl.u32 %v60, 7
  %v62 = vsub.s32 4, %v61
  %v63 = vrot.slane %v15, %v62
  %v64 = vmul.f32 %v58, %v63
  %v65 = vadd.f32 %v55, %v64
  %v66 = vld [vmem:[%s2] sm:$0x1]
  %v68 = vlaneseq
  %v69 = vshrl.u32 %v68, 7
  %v70 = vsub.s32 0, %v69
  %v71 = vrot.slane %v66, %v70
  %v73 = vadd.f32 %v65, %v71
  %vm74 = vcmask 23552
  %75 = vst.msk [vmem:[%s3] sm:$0xff] %vm74, %v73
  // Predicated region
  $region14: #{tpu_custom_call.1} parent=0 // pred_check
    _
  $region15: #{tpu_custom_call.1} parent=0 // pred_check_branch
    %77 = sbr.rel (0) target = $region17
  $region16: #{tpu_custom_call.1} parent=0 // pred_region
    _
  $region17: #{tpu_custom_call.1} parent=0 // pred_fallthru
    _
  // Predicated region
  $region18: #{tpu_custom_call.1} parent=0 // pred_check
    _
  $region19: #{tpu_custom_call.1} parent=0 // pred_check_branch
    %79 = sbr.rel (0) target = $region21
  $region20: #{tpu_custom_call.1} parent=0 // pred_region
    _
  $region21: #{tpu_custom_call.1} parent=0 // pred_fallthru
    _

</llo_original>
